<compile_context>
chip_gen: v7x
topology: tpu7x:2x2x1
jax: 0.10.0
libtpu: 0.0.40
codegen_flags: <defaults>
</compile_context>

<pallas_src>
import numpy as np
import jax
import jax.numpy as jnp
from jax.experimental import pallas as pl
from jax.experimental.pallas import tpu as pltpu


def _round_up(x, m):
    return ((x + m - 1) // m) * m


# ----------------------------- Pallas kernel --------------------------------

def _edges_fused_kernel(s_ref, l_ref, r_ref,
                        w1s_ref, w1l_ref, w1r_ref, b1_ref,
                        w2_ref, b2_ref,
                        out_ref):
    dt = w1s_ref.dtype  # bf16 matmul operands, f32 accumulation
    # Fused first layer (both heads): the torch.cat is expressed as three
    # accumulated row-block matmuls, N = 2*hidden = 128 lanes (MXU-dense).
    # Inputs arrive as f32 tiles and are cast to bf16 in-vreg (free on VPU).
    h = jnp.dot(s_ref[...].astype(dt), w1s_ref[...],
                preferred_element_type=jnp.float32)
    h = h + jnp.dot(l_ref[...].astype(dt), w1l_ref[...],
                    preferred_element_type=jnp.float32)
    h = h + jnp.dot(r_ref[...].astype(dt), w1r_ref[...],
                    preferred_element_type=jnp.float32)
    # Bias add + ReLU in f32 (v5e has no bf16 VPU; accumulation stays f32).
    h = jnp.maximum(h + b1_ref[...], 0.0)
    # Fused second layer: block-diagonal weight -> single lane-dense output.
    out = jnp.dot(h.astype(dt), w2_ref[...], preferred_element_type=jnp.float32)
    # bf16 store halves the dominant HBM writeback stream (kernel is HBM-bound).
    out_ref[...] = (out + b2_ref[...]).astype(out_ref.dtype)


def _choose_tile(B, max_tile):
    # ~half the batch per tile (so v7x's 2 TensorCores both get grid steps when
    # the batch is big enough), rounded to a multiple of 16 for bf16 sublane
    # packing of the output block, capped to keep per-step VMEM a few MB.
    half = _round_up(max(-(-B // 2), 8), 16)
    return max(16, min(max_tile, half))


def edges_heads_pallas(summary, left, right, packed, *, max_tile=4096):
    """Runs both fused MLP heads on every row; returns (B, O_pad) bf16 logits."""
    B, D = summary.shape
    twoH = packed["b1"].shape[1]
    O_pad = packed["b2"].shape[1]

    tm = _choose_tile(B, max_tile)
    n_tiles = pl.cdiv(B, tm)   # ragged last block; OOB rows masked on writeback

    row_spec = pl.BlockSpec((tm, D), lambda i: (i, 0))
    const = lambda shape: pl.BlockSpec(shape, lambda i: (0, 0))  # VMEM-resident

    return pl.pallas_call(
        _edges_fused_kernel,
        out_shape=jax.ShapeDtypeStruct((B, O_pad), jnp.bfloat16),
        grid=(n_tiles,),
        in_specs=[
            row_spec, row_spec, row_spec,          # summary / left / right tiles
            const((D, twoH)),                      # W1 row-block (summary)
            const((D, twoH)),                      # W1 row-block (left)
            const((D, twoH)),                      # W1 row-block (right)
            const((1, twoH)),                      # fused b1
            const((twoH, O_pad)),                  # block-diagonal fused W2
            const((1, O_pad)),                     # fused (padded) b2
        ],
        out_specs=pl.BlockSpec((tm, O_pad), lambda i: (i, 0)),
        compiler_params=pltpu.CompilerParams(
            dimension_semantics=("parallel",)),    # megacore / v7x 2-TC sharding
    )(
        summary, left, right,
        packed["w1_s"], packed["w1_l"], packed["w1_r"], packed["b1"],
        packed["w2"], packed["b2"],
    )


# --------------------------- parameter packing -------------------------------

def pack_params(params, dtype=jnp.bfloat16):
    """Fuse lr_model / root_edge_model weights into one lane-dense pipeline."""
    w1 = jnp.concatenate([params["w1_lr"], params["w1_rt"]], axis=1)   # (3D, 2H)
    in_dim, twoH = w1.shape
    D = in_dim // 3
    H = params["w1_lr"].shape[1]
    O_lr = params["w2_lr"].shape[1]
    O_rt = params["w2_rt"].shape[1]
    O_pad = _round_up(max(O_lr + O_rt, 128), 128)  # lane-dense output width

    w2 = jnp.zeros((twoH, O_pad), jnp.float32)
    w2 = w2.at[:H, :O_lr].set(params["w2_lr"])
    w2 = w2.at[H:, O_lr:O_lr + O_rt].set(params["w2_rt"])

    b1 = jnp.concatenate([params["b1_lr"], params["b1_rt"]], axis=1)   # (1, 2H)
    b2 = jnp.zeros((1, O_pad), jnp.float32)
    b2 = b2.at[:, :O_lr].set(params["b2_lr"])
    b2 = b2.at[:, O_lr:O_lr + O_rt].set(params["b2_rt"])

    return {
        "w1_s": w1[:D].astype(dtype),
        "w1_l": w1[D:2 * D].astype(dtype),
        "w1_r": w1[2 * D:].astype(dtype),
        "b1": b1.astype(jnp.float32),
        "w2": w2.astype(dtype),
        "b2": b2.astype(jnp.float32),
        "O_lr": O_lr,
        "O_rt": O_rt,
    }


# ------------------------- module-level glue (host) --------------------------

def _sample(ret, actions_list, random_p, np_rng):
    """Mirror of EdgesModelCategorical.sample (Gumbel-max + random override)."""
    # TODO(synk): exact bitwise match of torch.distributions.Categorical /
    # np.random draws is not reproducible across frameworks; semantics preserved.
    logits = np.asarray(ret["logits"], dtype=np.float64)
    gumbel = np_rng.gumbel(size=logits.shape)
    edge_action = np.argmax(logits + gumbel, axis=-1).astype(np.int64)
    rand_flag = np_rng.random(edge_action.shape[0]) <= np.asarray(random_p)
    rand_num = int(rand_flag.sum())
    if rand_num > 0:
        rand_actions = np_rng.choice(actions_list, rand_num)
        edge_action[rand_flag] = rand_actions
    return edge_action


def edges_model_forward(packed, summary_reps, left_trees, right_trees,
                        sample, input_dict, np_rng=None):
    # Hot path: fused heads in one Pallas kernel, one lane-dense bf16 output,
    # one device-to-host sync, zero wrapper-side XLA ops.
    logits_dev = edges_heads_pallas(summary_reps, left_trees, right_trees, packed)
    logits_all = np.asarray(jax.block_until_ready(logits_dev)).astype(np.float32)

    O_lr, O_rt = packed["O_lr"], packed["O_rt"]
    lr_logits = logits_all[:, :O_lr]
    root_logits = logits_all[:, O_lr:O_lr + O_rt]

    batch_nb_seq = np.asarray(input_dict["batch_nb_seq"])
    root_edges_flag = batch_nb_seq == 2
    first_edges_flag = batch_nb_seq > 2

    lr_actions_list = np.arange(O_lr)
    root_edge_actions_list = np.arange(O_rt)

    ret = {}
    edge_actions = np.zeros(len(batch_nb_seq), dtype=np.int64)

    if first_edges_flag.sum() > 0:
        first_edges_ret = {"logits": lr_logits[first_edges_flag]}
        if sample:
            random_p = np.asarray(input_dict["list_random_action_prob"])[first_edges_flag]
            actions = _sample(first_edges_ret, lr_actions_list, random_p, np_rng)
            ret["first_edges_actions"] = actions
            edge_actions[first_edges_flag] = actions
        ret["first_edges_ret"] = first_edges_ret

    if root_edges_flag.sum() > 0:
        root_edges_ret = {"logits": root_logits[root_edges_flag]}
        if sample:
            random_p = np.asarray(input_dict["list_random_action_prob"])[root_edges_flag]
            actions = _sample(root_edges_ret, root_edge_actions_list, random_p, np_rng)
            ret["root_edges_actions"] = actions
            edge_actions[root_edges_flag] = actions
        ret["root_edges_ret"] = root_edges_ret

    if sample:
        ret["edge_actions"] = edge_actions
    return ret


# ------------------------------ parameter init -------------------------------

def init_params(key, in_dim, hidden, out_lr, out_rt):
    ks = jax.random.split(key, 4)
    scale1 = 1.0 / np.sqrt(in_dim)
    scale2 = 1.0 / np.sqrt(hidden)
    return {
        "w1_lr": jax.random.normal(ks[0], (in_dim, hidden), jnp.float32) * scale1,
        "b1_lr": jnp.zeros((1, hidden), jnp.float32),
        "w2_lr": jax.random.normal(ks[1], (hidden, out_lr), jnp.float32) * scale2,
        "b2_lr": jnp.zeros((1, out_lr), jnp.float32),
        "w1_rt": jax.random.normal(ks[2], (in_dim, hidden), jnp.float32) * scale1,
        "b1_rt": jnp.zeros((1, hidden), jnp.float32),
        "w2_rt": jax.random.normal(ks[3], (hidden, out_rt), jnp.float32) * scale2,
        "b2_rt": jnp.zeros((1, out_rt), jnp.float32),
    }


def _reference_heads(rep, p):
    """Pure-JAX f32 reference of the two unfused MLP heads."""
    h = jnp.maximum(rep @ p["w1_lr"] + p["b1_lr"], 0.0)
    lr = h @ p["w2_lr"] + p["b2_lr"]
    g = jnp.maximum(rep @ p["w1_rt"] + p["b1_rt"], 0.0)
    rt = g @ p["w2_rt"] + p["b2_rt"]
    return lr, rt


# ------------------------------------ main ------------------------------------

if __name__ == "__main__":
    key = jax.random.PRNGKey(0)
    k_params, k_s, k_l, k_r = jax.random.split(key, 4)

    B = 24       # batch (exercises both a full and a ragged last grid block)
    D = 32       # per-representation feature dim (summary / left / right)
    HIDDEN = 64  # MLP hidden size per head (fused -> 128 lanes)
    O_LR = 16    # HEAD.OUTPUT_SIZE
    O_RT = 8     # ROOT_EDGE_HEAD.OUTPUT_SIZE

    params = init_params(k_params, 3 * D, HIDDEN, O_LR, O_RT)
    packed = pack_params(params)

    summary_reps = jax.random.normal(k_s, (B, D), jnp.float32)
    left_trees = jax.random.normal(k_l, (B, D), jnp.float32)
    right_trees = jax.random.normal(k_r, (B, D), jnp.float32)

    batch_nb_seq = np.array([2, 3, 4, 2, 5, 2, 6, 3] * 3, dtype=np.int64)
    input_dict = {
        "batch_nb_seq": batch_nb_seq,
        "list_random_action_prob": np.full((B,), 0.1, dtype=np.float64),
    }

    # sample=False path (pure forward, deterministic)
    ret = edges_model_forward(packed, summary_reps, left_trees, right_trees,
                              sample=False, input_dict=input_dict)

    # Correctness check against pure-JAX f32 reference (kernel uses bf16
    # operands with f32 accumulation and bf16 output -> loose tolerance).
    rep = jnp.concatenate([summary_reps, left_trees, right_trees], axis=1)
    lr_ref, rt_ref = _reference_heads(rep, params)
    lr_ref = np.asarray(lr_ref)
    rt_ref = np.asarray(rt_ref)
    first_flag = batch_nb_seq > 2
    root_flag = batch_nb_seq == 2
    assert np.allclose(ret["first_edges_ret"]["logits"], lr_ref[first_flag],
                       rtol=5e-2, atol=5e-2), "lr head mismatch"
    assert np.allclose(ret["root_edges_ret"]["logits"], rt_ref[root_flag],
                       rtol=5e-2, atol=5e-2), "root head mismatch"

    # sample=True path (stochastic action selection, host-side RNG glue).
    np_rng = np.random.default_rng(0)
    ret_s = edges_model_forward(packed, summary_reps, left_trees, right_trees,
                                sample=True, input_dict=input_dict, np_rng=np_rng)
    assert ret_s["edge_actions"].shape == (B,)
    assert (ret_s["edge_actions"][first_flag] < O_LR).all()
    assert (ret_s["edge_actions"][root_flag] < O_RT).all()

    print("KERNEL_OK")
</pallas_src>

<mosaic_0001>
module attributes {stable_mosaic.version = 11 : i64} {
  func.func @_edges_fused_kernel(%arg0: i32, %arg1: memref<16x32xf32, #tpu.memory_space<vmem>>, %arg2: memref<16x32xf32, #tpu.memory_space<vmem>>, %arg3: memref<16x32xf32, #tpu.memory_space<vmem>>, %arg4: memref<32x128xbf16, #tpu.memory_space<vmem>>, %arg5: memref<32x128xbf16, #tpu.memory_space<vmem>>, %arg6: memref<32x128xbf16, #tpu.memory_space<vmem>>, %arg7: memref<1x128xf32, #tpu.memory_space<vmem>>, %arg8: memref<128x128xbf16, #tpu.memory_space<vmem>>, %arg9: memref<1x128xf32, #tpu.memory_space<vmem>>, %arg10: memref<16x128xbf16, #tpu.memory_space<vmem>>) attributes {dimension_semantics = [#tpu.dimension_semantics<parallel>], iteration_bounds = array<i64: 2>, scalar_prefetch = 0 : i64, scratch_operands = 0 : i64, tpu.core_type = #tpu.core_type<tc>, window_params = [{transform_indices = @transform_0, window_bounds = array<i64: 16, 32>}, {transform_indices = @transform_1, window_bounds = array<i64: 16, 32>}, {transform_indices = @transform_2, window_bounds = array<i64: 16, 32>}, {pipeline_mode = #tpu.pipeline_mode<synchronous>, transform_indices = @transform_3, window_bounds = array<i64: 32, 128>}, {pipeline_mode = #tpu.pipeline_mode<synchronous>, transform_indices = @transform_4, window_bounds = array<i64: 32, 128>}, {pipeline_mode = #tpu.pipeline_mode<synchronous>, transform_indices = @transform_5, window_bounds = array<i64: 32, 128>}, {pipeline_mode = #tpu.pipeline_mode<synchronous>, transform_indices = @transform_6, window_bounds = array<i64: 1, 128>}, {pipeline_mode = #tpu.pipeline_mode<synchronous>, transform_indices = @transform_7, window_bounds = array<i64: 128, 128>}, {pipeline_mode = #tpu.pipeline_mode<synchronous>, transform_indices = @transform_8, window_bounds = array<i64: 1, 128>}, {transform_indices = @transform_9, window_bounds = array<i64: 16, 128>}]} {
    %c0 = arith.constant 0 : index
    %c0_0 = arith.constant 0 : index
    %0 = vector.load %arg1[%c0, %c0_0] : memref<16x32xf32, #tpu.memory_space<vmem>>, vector<16x32xf32>
    %1 = arith.truncf %0 : vector<16x32xf32> to vector<16x32xbf16>
    %c0_1 = arith.constant 0 : index
    %c0_2 = arith.constant 0 : index
    %2 = vector.load %arg4[%c0_1, %c0_2] : memref<32x128xbf16, #tpu.memory_space<vmem>>, vector<32x128xbf16>
    %cst = arith.constant dense<0.000000e+00> : vector<16x128xf32>
    %3 = tpu.matmul %1, %2, %cst {dimension_numbers = #tpu.dot_dimension_numbers<[1], [0], [0], [1], [0, 0, 1, 1], [], []>} : vector<16x32xbf16>, vector<32x128xbf16>, vector<16x128xf32> -> vector<16x128xf32>
    %c0_3 = arith.constant 0 : index
    %c0_4 = arith.constant 0 : index
    %4 = vector.load %arg2[%c0_3, %c0_4] : memref<16x32xf32, #tpu.memory_space<vmem>>, vector<16x32xf32>
    %5 = arith.truncf %4 : vector<16x32xf32> to vector<16x32xbf16>
    %c0_5 = arith.constant 0 : index
    %c0_6 = arith.constant 0 : index
    %6 = vector.load %arg5[%c0_5, %c0_6] : memref<32x128xbf16, #tpu.memory_space<vmem>>, vector<32x128xbf16>
    %cst_7 = arith.constant dense<0.000000e+00> : vector<16x128xf32>
    %7 = tpu.matmul %5, %6, %cst_7 {dimension_numbers = #tpu.dot_dimension_numbers<[1], [0], [0], [1], [0, 0, 1, 1], [], []>} : vector<16x32xbf16>, vector<32x128xbf16>, vector<16x128xf32> -> vector<16x128xf32>
    %8 = arith.addf %3, %7 : vector<16x128xf32>
    %c0_8 = arith.constant 0 : index
    %c0_9 = arith.constant 0 : index
    %9 = vector.load %arg3[%c0_8, %c0_9] : memref<16x32xf32, #tpu.memory_space<vmem>>, vector<16x32xf32>
    %10 = arith.truncf %9 : vector<16x32xf32> to vector<16x32xbf16>
    %c0_10 = arith.constant 0 : index
    %c0_11 = arith.constant 0 : index
    %11 = vector.load %arg6[%c0_10, %c0_11] : memref<32x128xbf16, #tpu.memory_space<vmem>>, vector<32x128xbf16>
    %cst_12 = arith.constant dense<0.000000e+00> : vector<16x128xf32>
    %12 = tpu.matmul %10, %11, %cst_12 {dimension_numbers = #tpu.dot_dimension_numbers<[1], [0], [0], [1], [0, 0, 1, 1], [], []>} : vector<16x32xbf16>, vector<32x128xbf16>, vector<16x128xf32> -> vector<16x128xf32>
    %13 = arith.addf %8, %12 : vector<16x128xf32>
    %c0_13 = arith.constant 0 : index
    %c0_14 = arith.constant 0 : index
    %14 = vector.load %arg7[%c0_13, %c0_14] : memref<1x128xf32, #tpu.memory_space<vmem>>, vector<1x128xf32>
    %15 = vector.broadcast %14 : vector<1x128xf32> to vector<16x128xf32>
    %16 = arith.addf %13, %15 : vector<16x128xf32>
    %cst_15 = arith.constant 0.000000e+00 : f32
    %17 = vector.broadcast %cst_15 : f32 to vector<16x128xf32>
    %18 = arith.maximumf %16, %17 : vector<16x128xf32>
    %19 = arith.truncf %18 : vector<16x128xf32> to vector<16x128xbf16>
    %c0_16 = arith.constant 0 : index
    %c0_17 = arith.constant 0 : index
    %20 = vector.load %arg8[%c0_16, %c0_17] : memref<128x128xbf16, #tpu.memory_space<vmem>>, vector<128x128xbf16>
    %cst_18 = arith.constant dense<0.000000e+00> : vector<16x128xf32>
    %21 = tpu.matmul %19, %20, %cst_18 {dimension_numbers = #tpu.dot_dimension_numbers<[1], [0], [0], [1], [0, 0, 1, 1], [], []>} : vector<16x128xbf16>, vector<128x128xbf16>, vector<16x128xf32> -> vector<16x128xf32>
    %c0_19 = arith.constant 0 : index
    %c0_20 = arith.constant 0 : index
    %22 = vector.load %arg9[%c0_19, %c0_20] : memref<1x128xf32, #tpu.memory_space<vmem>>, vector<1x128xf32>
    %23 = vector.broadcast %22 : vector<1x128xf32> to vector<16x128xf32>
    %24 = arith.addf %21, %23 : vector<16x128xf32>
    %25 = arith.truncf %24 : vector<16x128xf32> to vector<16x128xbf16>
    %c0_21 = arith.constant 0 : index
    %c0_22 = arith.constant 0 : index
    %26 = vector.load %arg10[%c0_21, %c0_22] : memref<16x128xbf16, #tpu.memory_space<vmem>>, vector<16x128xbf16>
    tpu.vector_store %arg10[%c0_21, %c0_22], %25 {strides = array<i32>} : memref<16x128xbf16, #tpu.memory_space<vmem>>, vector<16x128xbf16>,
    return
  }
  func.func @transform_0(%arg0: i32) -> (i32, i32) {
    %c0_i32 = arith.constant 0 : i32
    %c0_i32_0 = arith.constant 0 : i32
    return %arg0, %c0_i32 : i32, i32
  }
  func.func @transform_1(%arg0: i32) -> (i32, i32) {
    %c0_i32 = arith.constant 0 : i32
    %c0_i32_0 = arith.constant 0 : i32
    return %arg0, %c0_i32 : i32, i32
  }
  func.func @transform_2(%arg0: i32) -> (i32, i32) {
    %c0_i32 = arith.constant 0 : i32
    %c0_i32_0 = arith.constant 0 : i32
    return %arg0, %c0_i32 : i32, i32
  }
  func.func @transform_3(%arg0: i32) -> (i32, i32) {
    %c0_i32 = arith.constant 0 : i32
    %c0_i32_0 = arith.constant 0 : i32
    %c0_i32_1 = arith.constant 0 : i32
    return %c0_i32, %c0_i32_0 : i32, i32
  }
  func.func @transform_4(%arg0: i32) -> (i32, i32) {
    %c0_i32 = arith.constant 0 : i32
    %c0_i32_0 = arith.constant 0 : i32
    %c0_i32_1 = arith.constant 0 : i32
    return %c0_i32, %c0_i32_0 : i32, i32
  }
  func.func @transform_5(%arg0: i32) -> (i32, i32) {
    %c0_i32 = arith.constant 0 : i32
    %c0_i32_0 = arith.constant 0 : i32
    %c0_i32_1 = arith.constant 0 : i32
    return %c0_i32, %c0_i32_0 : i32, i32
  }
  func.func @transform_6(%arg0: i32) -> (i32, i32) {
    %c0_i32 = arith.constant 0 : i32
    %c0_i32_0 = arith.constant 0 : i32
    %c0_i32_1 = arith.constant 0 : i32
    return %c0_i32, %c0_i32_0 : i32, i32
  }
  func.func @transform_7(%arg0: i32) -> (i32, i32) {
    %c0_i32 = arith.constant 0 : i32
    %c0_i32_0 = arith.constant 0 : i32
    %c0_i32_1 = arith.constant 0 : i32
    return %c0_i32, %c0_i32_0 : i32, i32
  }
  func.func @transform_8(%arg0: i32) -> (i32, i32) {
    %c0_i32 = arith.constant 0 : i32
    %c0_i32_0 = arith.constant 0 : i32
    %c0_i32_1 = arith.constant 0 : i32
    return %c0_i32, %c0_i32_0 : i32, i32
  }
  func.func @transform_9(%arg0: i32) -> (i32, i32) {
    %c0_i32 = arith.constant 0 : i32
    %c0_i32_0 = arith.constant 0 : i32
    return %arg0, %c0_i32 : i32, i32
  }
}

</mosaic_0001>

<llo_original>
// kernel: tpu_custom_call.1
$region0: #{tpu_custom_call.1}
  #allocation0 [shape = 'u32[]', space=smem, size = 0x4, offset = 0x4, fixed_abs, tag = 'smem constant byte address 0x4 - core index']
  #allocation1 [shape = 'u32[144,128]{1,0:T(1,128)}', space=vmem, size = 0x12000, scoped, tag = 'internal scratch']
  %s0 = inlined_call_operand.hbm [shape: f32[24,32], index: 0, kind: input, shape index: {}]
  %s1 = inlined_call_operand.hbm [shape: f32[24,32], index: 1, kind: input, shape index: {}]
  %s2 = inlined_call_operand.hbm [shape: f32[24,32], index: 2, kind: input, shape index: {}]
  %s3 = inlined_call_operand.hbm [shape: bf16[32,128], index: 3, kind: input, shape index: {}]
  %s4 = inlined_call_operand.hbm [shape: bf16[32,128], index: 4, kind: input, shape index: {}]
  %s5 = inlined_call_operand.vmem [shape: bf16[32,128], index: 5, kind: input, shape index: {}]
  %s6 = inlined_call_operand.vmem [shape: f32[1,128], index: 6, kind: input, shape index: {}]
  %s7 = inlined_call_operand.hbm [shape: bf16[128,128], index: 7, kind: input, shape index: {}]
  %s8 = inlined_call_operand.vmem [shape: f32[1,128], index: 8, kind: input, shape index: {}]
  %s9 = inlined_call_operand.hbm [shape: bf16[24,128], index: 9, kind: output, shape index: {}]
  %s10 = sld [smem:[#allocation0]]
  $region93: #{tpu_custom_call.1} parent=0
    _
  %s12 = ssub.s32 1, %s10
  %s13 = scalar_select 0, %s12, %s10
  $region1: #{tpu_custom_call.1} parent=0
    #allocation2 [shape = 'u8[16384]{0}', space=vmem, size = 0x4000, scoped, tag = 'input window, operand 0']
    #allocation3 [shape = 's32[2]{0}', space=sflag, size = 0x8, scoped, tag = 'scoped memory for tpu_custom_call.1']
    #allocation4 [shape = 's32[2]{0}', space=sflag, size = 0x8, scoped, tag = 'scoped memory for tpu_custom_call.1']
    #allocation5 [shape = 'u8[16384]{0}', space=vmem, size = 0x4000, scoped, tag = 'input window, operand 1']
    #allocation6 [shape = 's32[2]{0}', space=sflag, size = 0x8, scoped, tag = 'scoped memory for tpu_custom_call.1']
    #allocation7 [shape = 'u8[16384]{0}', space=vmem, size = 0x4000, scoped, tag = 'input window, operand 2']
    #allocation8 [shape = 'u8[8192]{0}', space=vmem, size = 0x2000, scoped, tag = 'input window, operand 3, single buffered']
    #allocation9 [shape = 's32[1]{0}', space=sflag, size = 0x4, scoped, tag = 'scoped memory for tpu_custom_call.1']
    #allocation10 [shape = 'u8[8192]{0}', space=vmem, size = 0x2000, scoped, tag = 'input window, operand 4, single buffered']
    #allocation11 [shape = 'u8[32768]{0}', space=vmem, size = 0x8000, scoped, tag = 'input window, operand 7, single buffered']
    #allocation12 [shape = 's32[1]{0}', space=sflag, size = 0x4, scoped, tag = 'scoped memory for tpu_custom_call.1']
    #allocation13 [shape = 'u8[8192]{0}', space=vmem, size = 0x2000, scoped, tag = 'output window, operand 0']
    %14 = vsyncpa [#allocation3], 0
    %s15 = scalar_lea.sflag [#allocation3], 1
    %16 = vsyncpa %s15, 0
    %17 = vsyncpa [#allocation6], 0
    %s18 = scalar_lea.sflag [#allocation6], 1
    %19 = vsyncpa %s18, 0
    %20 = vsyncpa [#allocation9], 0
    %21 = vsyncpa [#allocation12], 0
    %22 = vsyncpa [#allocation4], 0
    %s23 = scalar_lea.sflag [#allocation4], 1
    %24 = vsyncpa %s23, 0
    loop: start=0, step=1, limit=4
    $region2: #{tpu_custom_call.1} parent=1 // loop_pre_header
      _
    $region3: #{tpu_custom_call.1} parent=1 // loop_header
      %s26 = sphi 0, %s30
      %p27 = scmp.ge.s32.totalorder %s26, 4
      %s36 = sphi 0, %s38
      %s39 = sphi 0, %s36
      %s40 = sphi 0, %s39
      %s56 = sphi 0, %s40
      %s62 = sphi 0, %s64
      %s65 = sphi 0, %s62
      %s66 = sphi 0, %s65
      %s82 = sphi 0, %s66
      %s88 = sphi 0, %s90
      %s91 = sphi 0, %s88
      %s92 = sphi 0, %s91
      %s108 = sphi 0, %s92
      %s112 = sphi 0, %s112
      %s114 = sphi 0, %s112
      %s115 = sphi 0, %s114
      %s129 = sphi 0, %s115
      %s133 = sphi 0, %s133
      %s135 = sphi 0, %s133
      %s136 = sphi 0, %s135
      %s150 = sphi 0, %s136
      %s154 = sphi 0, %s154
      %s156 = sphi 0, %s154
      %s157 = sphi 0, %s156
      %s171 = sphi 0, %s157
      %s175 = sphi 0, %s175
      %s177 = sphi 0, %s175
      %s178 = sphi 0, %s177
      %s192 = sphi 0, %s178
      %s196 = sphi 0, %s196
      %s198 = sphi 0, %s196
      %s199 = sphi 0, %s198
      %s213 = sphi 0, %s199
      %s217 = sphi 0, %s217
      %s219 = sphi 0, %s217
      %s220 = sphi 0, %s219
      %s234 = sphi 0, %s220
      %s240 = sphi 0, %s242
      %s243 = sphi 0, %s240
      %s244 = sphi 0, %s243
      %s260 = sphi 0, %s244
    $region4: #{tpu_custom_call.1} parent=1 // loop_header_branch
      %29 = sbr.rel (%p27) target = $region8
    $region5: #{tpu_custom_call.1} parent=1 // loop_body
      %s31 = ssub.s32 %s26, 1
      %s32 = ssub.s32 %s26, 2
      %s33 = sadd.s32 %s26, 1
      %s34 = ssub.s32 %s26, %s33
      %p35 = scmp.eq.s32.totalorder %s34, 0
      %s37 = sadd.s32 %s36, 1
      %s38 = scalar_select %p35, %s36, %s37
      %p41 = pneg %p35
      %p42 = scmp.eq.s32.totalorder %s26, 1
      %p43 = por %p41, %p42
      %p44 = scmp.ne.s32.totalorder %s36, %s39
      %p45 = scmp.eq.s32.totalorder %s26, 0
      %p46 = por %p44, %p45
      %p47 = scmp.ne.s32.totalorder %s36, %s39
      %p48 = scmp.eq.s32.totalorder %s31, 1
      %p49 = por %p47, %p48
      %p50 = scmp.ne.s32.totalorder %s39, %s40
      %p51 = scmp.eq.s32.totalorder %s31, 0
      %p52 = por %p50, %p51
      %p53 = scmp.ne.s32.totalorder %s39, %s40
      %p54 = scmp.eq.s32.totalorder %s32, 1
      %p55 = por %p53, %p54
      %p57 = scmp.ne.s32.totalorder %s40, %s56
      %p58 = scmp.eq.s32.totalorder %s32, 0
      %p59 = por %p57, %p58
      %s60 = ssub.s32 %s26, %s33
      %p61 = scmp.eq.s32.totalorder %s60, 0
      %s63 = sadd.s32 %s62, 1
      %s64 = scalar_select %p61, %s62, %s63
      %p67 = pneg %p61
      %p68 = scmp.eq.s32.totalorder %s26, 1
      %p69 = por %p67, %p68
      %p70 = scmp.ne.s32.totalorder %s62, %s65
      %p71 = scmp.eq.s32.totalorder %s26, 0
      %p72 = por %p70, %p71
      %p73 = scmp.ne.s32.totalorder %s62, %s65
      %p74 = scmp.eq.s32.totalorder %s31, 1
      %p75 = por %p73, %p74
      %p76 = scmp.ne.s32.totalorder %s65, %s66
      %p77 = scmp.eq.s32.totalorder %s31, 0
      %p78 = por %p76, %p77
      %p79 = scmp.ne.s32.totalorder %s65, %s66
      %p80 = scmp.eq.s32.totalorder %s32, 1
      %p81 = por %p79, %p80
      %p83 = scmp.ne.s32.totalorder %s66, %s82
      %p84 = scmp.eq.s32.totalorder %s32, 0
      %p85 = por %p83, %p84
      %s86 = ssub.s32 %s26, %s33
      %p87 = scmp.eq.s32.totalorder %s86, 0
      %s89 = sadd.s32 %s88, 1
      %s90 = scalar_select %p87, %s88, %s89
      %p93 = pneg %p87
      %p94 = scmp.eq.s32.totalorder %s26, 1
      %p95 = por %p93, %p94
      %p96 = scmp.ne.s32.totalorder %s88, %s91
      %p97 = scmp.eq.s32.totalorder %s26, 0
      %p98 = por %p96, %p97
      %p99 = scmp.ne.s32.totalorder %s88, %s91
      %p100 = scmp.eq.s32.totalorder %s31, 1
      %p101 = por %p99, %p100
      %p102 = scmp.ne.s32.totalorder %s91, %s92
      %p103 = scmp.eq.s32.totalorder %s31, 0
      %p104 = por %p102, %p103
      %p105 = scmp.ne.s32.totalorder %s91, %s92
      %p106 = scmp.eq.s32.totalorder %s32, 1
      %p107 = por %p105, %p106
      %p109 = scmp.ne.s32.totalorder %s92, %s108
      %p110 = scmp.eq.s32.totalorder %s32, 0
      %p111 = por %p109, %p110
      %s113 = sadd.s32 %s112, 1
      %p116 = scmp.eq.s32.totalorder %s26, 1
      %p117 = scmp.ne.s32.totalorder %s112, %s114
      %p118 = scmp.eq.s32.totalorder %s26, 0
      %p119 = por %p117, %p118
      %p120 = scmp.ne.s32.totalorder %s112, %s114
      %p121 = scmp.eq.s32.totalorder %s31, 1
      %p122 = por %p120, %p121
      %p123 = scmp.ne.s32.totalorder %s114, %s115
      %p124 = scmp.eq.s32.totalorder %s31, 0
      %p125 = por %p123, %p124
      %p126 = scmp.ne.s32.totalorder %s114, %s115
      %p127 = scmp.eq.s32.totalorder %s32, 1
      %p128 = por %p126, %p127
      %p130 = scmp.ne.s32.totalorder %s115, %s129
      %p131 = scmp.eq.s32.totalorder %s32, 0
      %p132 = por %p130, %p131
      %s134 = sadd.s32 %s133, 1
      %p137 = scmp.eq.s32.totalorder %s26, 1
      %p138 = scmp.ne.s32.totalorder %s133, %s135
      %p139 = scmp.eq.s32.totalorder %s26, 0
      %p140 = por %p138, %p139
      %p141 = scmp.ne.s32.totalorder %s133, %s135
      %p142 = scmp.eq.s32.totalorder %s31, 1
      %p143 = por %p141, %p142
      %p144 = scmp.ne.s32.totalorder %s135, %s136
      %p145 = scmp.eq.s32.totalorder %s31, 0
      %p146 = por %p144, %p145
      %p147 = scmp.ne.s32.totalorder %s135, %s136
      %p148 = scmp.eq.s32.totalorder %s32, 1
      %p149 = por %p147, %p148
      %p151 = scmp.ne.s32.totalorder %s136, %s150
      %p152 = scmp.eq.s32.totalorder %s32, 0
      %p153 = por %p151, %p152
      %s155 = sadd.s32 %s154, 1
      %p158 = scmp.eq.s32.totalorder %s26, 1
      %p159 = scmp.ne.s32.totalorder %s154, %s156
      %p160 = scmp.eq.s32.totalorder %s26, 0
      %p161 = por %p159, %p160
      %p162 = scmp.ne.s32.totalorder %s154, %s156
      %p163 = scmp.eq.s32.totalorder %s31, 1
      %p164 = por %p162, %p163
      %p165 = scmp.ne.s32.totalorder %s156, %s157
      %p166 = scmp.eq.s32.totalorder %s31, 0
      %p167 = por %p165, %p166
      %p168 = scmp.ne.s32.totalorder %s156, %s157
      %p169 = scmp.eq.s32.totalorder %s32, 1
      %p170 = por %p168, %p169
      %p172 = scmp.ne.s32.totalorder %s157, %s171
      %p173 = scmp.eq.s32.totalorder %s32, 0
      %p174 = por %p172, %p173
      %s176 = sadd.s32 %s175, 1
      %p179 = scmp.eq.s32.totalorder %s26, 1
      %p180 = scmp.ne.s32.totalorder %s175, %s177
      %p181 = scmp.eq.s32.totalorder %s26, 0
      %p182 = por %p180, %p181
      %p183 = scmp.ne.s32.totalorder %s175, %s177
      %p184 = scmp.eq.s32.totalorder %s31, 1
      %p185 = por %p183, %p184
      %p186 = scmp.ne.s32.totalorder %s177, %s178
      %p187 = scmp.eq.s32.totalorder %s31, 0
      %p188 = por %p186, %p187
      %p189 = scmp.ne.s32.totalorder %s177, %s178
      %p190 = scmp.eq.s32.totalorder %s32, 1
      %p191 = por %p189, %p190
      %p193 = scmp.ne.s32.totalorder %s178, %s192
      %p194 = scmp.eq.s32.totalorder %s32, 0
      %p195 = por %p193, %p194
      %s197 = sadd.s32 %s196, 1
      %p200 = scmp.eq.s32.totalorder %s26, 1
      %p201 = scmp.ne.s32.totalorder %s196, %s198
      %p202 = scmp.eq.s32.totalorder %s26, 0
      %p203 = por %p201, %p202
      %p204 = scmp.ne.s32.totalorder %s196, %s198
      %p205 = scmp.eq.s32.totalorder %s31, 1
      %p206 = por %p204, %p205
      %p207 = scmp.ne.s32.totalorder %s198, %s199
      %p208 = scmp.eq.s32.totalorder %s31, 0
      %p209 = por %p207, %p208
      %p210 = scmp.ne.s32.totalorder %s198, %s199
      %p211 = scmp.eq.s32.totalorder %s32, 1
      %p212 = por %p210, %p211
      %p214 = scmp.ne.s32.totalorder %s199, %s213
      %p215 = scmp.eq.s32.totalorder %s32, 0
      %p216 = por %p214, %p215
      %s218 = sadd.s32 %s217, 1
      %p221 = scmp.eq.s32.totalorder %s26, 1
      %p222 = scmp.ne.s32.totalorder %s217, %s219
      %p223 = scmp.eq.s32.totalorder %s26, 0
      %p224 = por %p222, %p223
      %p225 = scmp.ne.s32.totalorder %s217, %s219
      %p226 = scmp.eq.s32.totalorder %s31, 1
      %p227 = por %p225, %p226
      %p228 = scmp.ne.s32.totalorder %s219, %s220
      %p229 = scmp.eq.s32.totalorder %s31, 0
      %p230 = por %p228, %p229
      %p231 = scmp.ne.s32.totalorder %s219, %s220
      %p232 = scmp.eq.s32.totalorder %s32, 1
      %p233 = por %p231, %p232
      %p235 = scmp.ne.s32.totalorder %s220, %s234
      %p236 = scmp.eq.s32.totalorder %s32, 0
      %p237 = por %p235, %p236
      %s238 = ssub.s32 %s26, %s33
      %p239 = scmp.eq.s32.totalorder %s238, 0
      %s241 = sadd.s32 %s240, 1
      %s242 = scalar_select %p239, %s240, %s241
      %p245 = pneg %p239
      %p246 = scmp.eq.s32.totalorder %s26, 1
      %p247 = por %p245, %p246
      %p248 = scmp.ne.s32.totalorder %s240, %s243
      %p249 = scmp.eq.s32.totalorder %s26, 0
      %p250 = por %p248, %p249
      %p251 = scmp.ne.s32.totalorder %s240, %s243
      %p252 = scmp.eq.s32.totalorder %s31, 1
      %p253 = por %p251, %p252
      %p254 = scmp.ne.s32.totalorder %s243, %s244
      %p255 = scmp.eq.s32.totalorder %s31, 0
      %p256 = por %p254, %p255
      %p257 = scmp.ne.s32.totalorder %s243, %s244
      %p258 = scmp.eq.s32.totalorder %s32, 1
      %p259 = por %p257, %p258
      %p261 = scmp.ne.s32.totalorder %s244, %s260
      %p262 = scmp.eq.s32.totalorder %s32, 0
      %p263 = por %p261, %p262
      %p264 = scmp.le.s32.totalorder 1, %s26
      %p265 = scmp.lt.s32.totalorder %s26, 3
      %p266 = pnand %p264, %p265
      %p267 = pneg %p266
      // Predicated region
      $region9: #{tpu_custom_call.1} parent=5 // pred_check
        _
      $region10: #{tpu_custom_call.1} parent=5 // pred_check_branch
        %269 = sbr.rel (%p266) target = $region12
      $region11: #{tpu_custom_call.1} parent=5 // pred_region
        %s270 = ssub.s32 %s26, 1
        // Predicated region
        $region13: #{tpu_custom_call.1} parent=11 // pred_check
          %p271 = pneg %p125
        $region14: #{tpu_custom_call.1} parent=11 // pred_check_branch
          %273 = sbr.rel (%p271) target = $region16
        $region15: #{tpu_custom_call.1} parent=11 // pred_region
          %s275 = ssub.s32 256, 256
          %276 = vsyncadd [#allocation9], %s275
          %s277 = sshll.u32 [#allocation8], 4
          %s278 = int_to_ptr.vmem [resolvable:$true] %s277
          %283 = dma.hbm_to_vmem [thread:$0]  %s3, 256, %s278, [#allocation9], 64, 64, 4
        $region16: #{tpu_custom_call.1} parent=11 // pred_fallthru
          _
        // Predicated region
        $region17: #{tpu_custom_call.1} parent=11 // pred_check
          %p284 = pneg %p146
        $region18: #{tpu_custom_call.1} parent=11 // pred_check_branch
          %286 = sbr.rel (%p284) target = $region20
        $region19: #{tpu_custom_call.1} parent=11 // pred_region
          %s288 = ssub.s32 256, 256
          %289 = vsyncadd [#allocation9], %s288
          %s290 = sshll.u32 [#allocation10], 4
          %s291 = int_to_ptr.vmem [resolvable:$true] %s290
          %296 = dma.hbm_to_vmem [thread:$0]  %s4, 256, %s291, [#allocation9], 64, 64, 4
        $region20: #{tpu_custom_call.1} parent=11 // pred_fallthru
          _
        // Predicated region
        $region21: #{tpu_custom_call.1} parent=11 // pred_check
          %p297 = pneg %p167
        $region22: #{tpu_custom_call.1} parent=11 // pred_check_branch
          %299 = sbr.rel (%p297) target = $region24
        $region23: #{tpu_custom_call.1} parent=11 // pred_region
          _
        $region24: #{tpu_custom_call.1} parent=11 // pred_fallthru
          _
        // Predicated region
        $region25: #{tpu_custom_call.1} parent=11 // pred_check
          %p300 = pneg %p188
        $region26: #{tpu_custom_call.1} parent=11 // pred_check_branch
          %302 = sbr.rel (%p300) target = $region28
        $region27: #{tpu_custom_call.1} parent=11 // pred_region
          _
        $region28: #{tpu_custom_call.1} parent=11 // pred_fallthru
          _
        // Predicated region
        $region29: #{tpu_custom_call.1} parent=11 // pred_check
          %p303 = pneg %p209
        $region30: #{tpu_custom_call.1} parent=11 // pred_check_branch
          %305 = sbr.rel (%p303) target = $region32
        $region31: #{tpu_custom_call.1} parent=11 // pred_region
          %s307 = ssub.s32 1024, 1024
          %308 = vsyncadd [#allocation12], %s307
          %s309 = sshll.u32 [#allocation11], 4
          %s310 = int_to_ptr.vmem [resolvable:$true] %s309
          %315 = dma.hbm_to_vmem [thread:$0]  %s7, 1024, %s310, [#allocation12], 64, 64, 4
        $region32: #{tpu_custom_call.1} parent=11 // pred_fallthru
          _
        // Predicated region
        $region33: #{tpu_custom_call.1} parent=11 // pred_check
          %p316 = pneg %p230
        $region34: #{tpu_custom_call.1} parent=11 // pred_check_branch
          %318 = sbr.rel (%p316) target = $region36
        $region35: #{tpu_custom_call.1} parent=11 // pred_region
          _
        $region36: #{tpu_custom_call.1} parent=11 // pred_fallthru
          _
      $region12: #{tpu_custom_call.1} parent=5 // pred_fallthru
        _
      %p319 = scmp.lt.s32.totalorder %s26, 2
      // Predicated region
      $region37: #{tpu_custom_call.1} parent=5 // pred_check
        %p320 = pneg %p319
      $region38: #{tpu_custom_call.1} parent=5 // pred_check_branch
        %322 = sbr.rel (%p320) target = $region40
      $region39: #{tpu_custom_call.1} parent=5 // pred_region
        // Predicated region
        $region41: #{tpu_custom_call.1} parent=39 // pred_check
          %p323 = pneg %p46
        $region42: #{tpu_custom_call.1} parent=39 // pred_check_branch
          %325 = sbr.rel (%p323) target = $region44
        $region43: #{tpu_custom_call.1} parent=39 // pred_region
          %s326 = sand.u32 %s36, 1
          %s327 = scalar_lea.sflag [#allocation3], %s326
          %s328 = sand.u32 %s36, 1
          %s329 = smul.addr %s328, 16
          %s330 = scalar_lea.vmem [#allocation2], %s329
          %s331 = smul.u32 2, %s26
          %s332 = ssub.s32 3, %s331
          %p333 = scmp.lt.s32.totalorder %s332, 2
          %s334 = scalar_select %p333, %s332, 2
          %s335 = smul.u32 128, %s334
          %s337 = ssub.s32 256, %s335
          %338 = vsyncadd %s327, %s337
          %p339 = scmp.ne.s32.totalorder 0, %s335
          %s340 = smul.addr %s331, 128
          %s341 = scalar_lea.hbm %s0, %s340
          %s342 = smul.u32 8, %s334
          %s343 = sshll.u32 %s330, 4
          %s344 = int_to_ptr.vmem [resolvable:$true] %s343
          %s345 = sshll.u32 %s342, 4
          %349 = dma.hbm_to_vmem [thread:$0]  (%p339), %s341, %s345, %s344, %s327, 128, 128, 8
        $region44: #{tpu_custom_call.1} parent=39 // pred_fallthru
          _
        // Predicated region
        $region45: #{tpu_custom_call.1} parent=39 // pred_check
          %p350 = pneg %p72
        $region46: #{tpu_custom_call.1} parent=39 // pred_check_branch
          %352 = sbr.rel (%p350) target = $region48
        $region47: #{tpu_custom_call.1} parent=39 // pred_region
          %s353 = sand.u32 %s26, 1
          %s354 = scalar_lea.sflag [#allocation6], %s353
          %s355 = sand.u32 %s62, 1
          %s356 = smul.addr %s355, 16
          %s357 = scalar_lea.vmem [#allocation5], %s356
          %s358 = smul.u32 2, %s26
          %s359 = ssub.s32 3, %s358
          %p360 = scmp.lt.s32.totalorder %s359, 2
          %s361 = scalar_select %p360, %s359, 2
          %s362 = smul.u32 128, %s361
          %s364 = ssub.s32 256, %s362
          %365 = vsyncadd %s354, %s364
          %p366 = scmp.ne.s32.totalorder 0, %s362
          %s367 = smul.addr %s358, 128
          %s368 = scalar_lea.hbm %s1, %s367
          %s369 = smul.u32 8, %s361
          %s370 = sshll.u32 %s357, 4
          %s371 = int_to_ptr.vmem [resolvable:$true] %s370
          %s372 = sshll.u32 %s369, 4
          %376 = dma.hbm_to_vmem [thread:$0]  (%p366), %s368, %s372, %s371, %s354, 128, 128, 8
        $region48: #{tpu_custom_call.1} parent=39 // pred_fallthru
          _
        // Predicated region
        $region49: #{tpu_custom_call.1} parent=39 // pred_check
          %p377 = pneg %p98
        $region50: #{tpu_custom_call.1} parent=39 // pred_check_branch
          %379 = sbr.rel (%p377) target = $region52
        $region51: #{tpu_custom_call.1} parent=39 // pred_region
          %s380 = sand.u32 %s26, 1
          %s381 = scalar_lea.sflag [#allocation6], %s380
          %s382 = sand.u32 %s88, 1
          %s383 = smul.addr %s382, 16
          %s384 = scalar_lea.vmem [#allocation7], %s383
          %s385 = smul.u32 2, %s26
          %s386 = ssub.s32 3, %s385
          %p387 = scmp.lt.s32.totalorder %s386, 2
          %s388 = scalar_select %p387, %s386, 2
          %s389 = smul.u32 128, %s388
          %s391 = ssub.s32 256, %s389
          %392 = vsyncadd %s381, %s391
          %p393 = scmp.ne.s32.totalorder 0, %s389
          %s394 = smul.addr %s385, 128
          %s395 = scalar_lea.hbm %s2, %s394
          %s396 = smul.u32 8, %s388
          %s397 = sshll.u32 %s384, 4
          %s398 = int_to_ptr.vmem [resolvable:$true] %s397
          %s399 = sshll.u32 %s396, 4
          %403 = dma.hbm_to_vmem [thread:$0]  (%p393), %s395, %s399, %s398, %s381, 128, 128, 8
        $region52: #{tpu_custom_call.1} parent=39 // pred_fallthru
          _
      $region40: #{tpu_custom_call.1} parent=5 // pred_fallthru
        _
      %p404 = scmp.le.s32.totalorder 1, %s26
      %p405 = scmp.lt.s32.totalorder %s26, 3
      %p406 = pnand %p404, %p405
      %p407 = pneg %p406
      // Predicated region
      $region53: #{tpu_custom_call.1} parent=5 // pred_check
        _
      $region54: #{tpu_custom_call.1} parent=5 // pred_check_branch
        %409 = sbr.rel (%p406) target = $region56
      $region55: #{tpu_custom_call.1} parent=5 // pred_region
        %s410 = ssub.s32 %s26, 1
        %s411 = sand.u32 %s39, 1
        %s412 = scalar_lea.sflag [#allocation3], %s411
        %s413 = sand.u32 %s39, 1
        %s414 = smul.addr %s413, 16
        %s415 = scalar_lea.vmem [#allocation2], %s414
        // Predicated region
        $region57: #{tpu_custom_call.1} parent=55 // pred_check
          %p416 = pneg %p52
        $region58: #{tpu_custom_call.1} parent=55 // pred_check_branch
          %418 = sbr.rel (%p416) target = $region60
        $region59: #{tpu_custom_call.1} parent=55 // pred_region
          %419 = dma.done %s412, 256
        $region60: #{tpu_custom_call.1} parent=55 // pred_fallthru
          _
        %s420 = sand.u32 %s31, 1
        %s421 = scalar_lea.sflag [#allocation6], %s420
        %s422 = sand.u32 %s65, 1
        %s423 = smul.addr %s422, 16
        %s424 = scalar_lea.vmem [#allocation5], %s423
        // Predicated region
        $region61: #{tpu_custom_call.1} parent=55 // pred_check
          %p425 = pneg %p78
        $region62: #{tpu_custom_call.1} parent=55 // pred_check_branch
          %427 = sbr.rel (%p425) target = $region64
        $region63: #{tpu_custom_call.1} parent=55 // pred_region
          %428 = dma.done %s421, 256
        $region64: #{tpu_custom_call.1} parent=55 // pred_fallthru
          _
        %s429 = sand.u32 %s31, 1
        %s430 = scalar_lea.sflag [#allocation6], %s429
        %s431 = sand.u32 %s91, 1
        %s432 = smul.addr %s431, 16
        %s433 = scalar_lea.vmem [#allocation7], %s432
        // Predicated region
        $region65: #{tpu_custom_call.1} parent=55 // pred_check
          %p434 = pneg %p104
        $region66: #{tpu_custom_call.1} parent=55 // pred_check_branch
          %436 = sbr.rel (%p434) target = $region68
        $region67: #{tpu_custom_call.1} parent=55 // pred_region
          %437 = dma.done %s430, 256
        $region68: #{tpu_custom_call.1} parent=55 // pred_fallthru
          _
        // Predicated region
        $region69: #{tpu_custom_call.1} parent=55 // pred_check
          %p438 = pneg %p125
        $region70: #{tpu_custom_call.1} parent=55 // pred_check_branch
          %440 = sbr.rel (%p438) target = $region72
        $region71: #{tpu_custom_call.1} parent=55 // pred_region
          %441 = dma.done [#allocation9], 256
        $region72: #{tpu_custom_call.1} parent=55 // pred_fallthru
          _
        // Predicated region
        $region73: #{tpu_custom_call.1} parent=55 // pred_check
          %p442 = pneg %p146
        $region74: #{tpu_custom_call.1} parent=55 // pred_check_branch
          %444 = sbr.rel (%p442) target = $region76
        $region75: #{tpu_custom_call.1} parent=55 // pred_region
          %445 = dma.done [#allocation9], 256
        $region76: #{tpu_custom_call.1} parent=55 // pred_fallthru
          _
        // Predicated region
        $region77: #{tpu_custom_call.1} parent=55 // pred_check
          %p446 = pneg %p209
        $region78: #{tpu_custom_call.1} parent=55 // pred_check_branch
          %448 = sbr.rel (%p446) target = $region80
        $region79: #{tpu_custom_call.1} parent=55 // pred_region
          %449 = dma.done [#allocation12], 1024
        $region80: #{tpu_custom_call.1} parent=55 // pred_fallthru
          _
        %s450 = sand.u32 %s39, 1
        %s451 = scalar_lea.sflag [#allocation3], %s450
        %s452 = sand.u32 %s39, 1
        %s453 = smul.addr %s452, 16
        %s454 = scalar_lea.vmem [#allocation2], %s453
        %p455 = pneg %p52
        %p456 = pneg %p49
        %s457 = sand.u32 %s31, 1
        %s458 = scalar_lea.sflag [#allocation6], %s457
        %s459 = sand.u32 %s65, 1
        %s460 = smul.addr %s459, 16
        %s461 = scalar_lea.vmem [#allocation5], %s460
        %p462 = pneg %p78
        %p463 = pneg %p75
        %s464 = sand.u32 %s31, 1
        %s465 = scalar_lea.sflag [#allocation6], %s464
        %s466 = sand.u32 %s91, 1
        %s467 = smul.addr %s466, 16
        %s468 = scalar_lea.vmem [#allocation7], %s467
        %p469 = pneg %p104
        %p470 = pneg %p101
        %p471 = pneg %p125
        %p472 = pneg %p122
        %p473 = pneg %p146
        %p474 = pneg %p143
        %p475 = pneg %p167
        %p476 = pneg %p164
        %p477 = pneg %p188
        %p478 = pneg %p185
        %p479 = pneg %p209
        %p480 = pneg %p206
        %p481 = pneg %p230
        %p482 = pneg %p227
        %p483 = pneg %p256
        %p484 = pneg %p253
        %s485 = sand.u32 %s243, 1
        %s486 = scalar_lea.sflag [#allocation4], %s485
        %s487 = sand.u32 %s243, 1
        %s488 = smul.addr %s487, 8
        %s489 = scalar_lea.vmem [#allocation13], %s488
        %s490 = smul.u32 2, %s31
        %s491 = ssub.s32 3, %s490
        %p492 = scmp.lt.s32.totalorder %s491, 2
        %s493 = scalar_select %p492, %s491, 2
        %s494 = smul.u32 128, %s493
        %s495 = smul.u32 2, %s31
        %s496 = ssub.s32 3, %s495
        %p497 = scmp.lt.s32.totalorder %s496, 2
        %s498 = scalar_select %p497, %s496, 2
        %s499 = smul.u32 128, %s498
        %s500 = smul.u32 2, %s31
        %s501 = ssub.s32 3, %s500
        %p502 = scmp.lt.s32.totalorder %s501, 2
        %s503 = scalar_select %p502, %s501, 2
        %s504 = smul.u32 128, %s503
        %s505 = smul.u32 2, %s31
        %s506 = ssub.s32 3, %s505
        %p507 = scmp.lt.s32.totalorder %s506, 2
        %s508 = scalar_select %p507, %s506, 2
        %s509 = smul.u32 64, %s508
        %v511 = vld [vmem:[%s415] sm:$0xff]
        %v512 = vld [vmem:[%s415 + $0x8] sm:$0xff]
        %v513 = vpack.c.bf16 %v512, %v511
        %v514 = vld [vmem:[#allocation8] sm:$0xf]
        %v515 = vld [vmem:[#allocation8 + $0x4] sm:$0xf]
        %v516 = vld [vmem:[#allocation8 + $0x8] sm:$0xf]
        %v517 = vld [vmem:[#allocation8 + $0xc] sm:$0xf]
        %v518 = vld [vmem:[%s424] sm:$0xff]
        %v519 = vld [vmem:[%s424 + $0x8] sm:$0xff]
        %v520 = vpack.c.bf16 %v519, %v518
        %v521 = vld [vmem:[#allocation10] sm:$0xf]
        %v522 = vld [vmem:[#allocation10 + $0x4] sm:$0xf]
        %v523 = vld [vmem:[#allocation10 + $0x8] sm:$0xf]
        %v524 = vld [vmem:[#allocation10 + $0xc] sm:$0xf]
        %v529 = vunpack.c.l.b16 %v521
        %v530 = vunpack.c.l.b16 %v522
        %v531 = vunpack.c.l.b16 %v523
        %v532 = vunpack.c.l.b16 %v524
        %v533 = vpack.c.b16 %v530, %v529
        %v534 = vpack.c.b16 %v532, %v531
        %vm537 = vcmask 261120
        %v539 = vsel %vm537, %v520, 0
        %541 = vmatprep.subr.bf16.mxu0 0
        %542 = vmatpush1.bf16.msra.mxu0 %v533
        %543 = vmatprep.subr.bf16.mxu0 0
        %544 = vmatpush1.bf16.msra.mxu0 %v534
        %545 = vmatprep.subr.bf16.mxu0 0
        %546 = vmatpush1.bf16.msra.mxu0 0
        %547 = vmatprep.subr.bf16.mxu0 0
        %548 = vmatpush1.bf16.msra.mxu0 0
        %549 = vmatprep.subr.bf16.mxu0 0
        %550 = vmatpush1.bf16.msra.mxu0 0
        %551 = vmatprep.subr.bf16.mxu0 0
        %552 = vmatpush1.bf16.msra.mxu0 0
        %553 = vmatprep.subr.bf16.mxu0 0
        %554 = vmatpush1.bf16.msra.mxu0 0
        %555 = vmatprep.subr.bf16.mxu0 0
        %556 = vmatpush1.bf16.msra.mxu0 0
        %557 = vmatprep.subr.bf16.mxu0 0
        %558 = vmatpush1.bf16.msra.mxu0 0
        %559 = vmatprep.subr.bf16.mxu0 0
        %560 = vmatpush1.bf16.msra.mxu0 0
        %561 = vmatprep.subr.bf16.mxu0 0
        %562 = vmatpush1.bf16.msra.mxu0 0
        %563 = vmatprep.subr.bf16.mxu0 0
        %564 = vmatpush1.bf16.msra.mxu0 0
        %565 = vmatprep.subr.bf16.mxu0 0
        %566 = vmatpush1.bf16.msra.mxu0 0
        %567 = vmatprep.subr.bf16.mxu0 0
        %568 = vmatpush1.bf16.msra.mxu0 0
        %569 = vmatprep.subr.bf16.mxu0 0
        %570 = vmatpush1.bf16.msra.mxu0 0
        %571 = vmatprep.subr.bf16.mxu0 0
        %572 = vmatpush1.bf16.msra.mxu0 0
        %573 = vmatprep.mubr.bf16.mxu0 0
        %574 = vmatmul.mubr.bf16.gmra.mrb[0].mxu0 %v539
        %v575 = vpop.f32.mrb[0].mxu0
        %v576 = vadd.f32 0.0, %v575
        %v577 = vpop.f32.mrb[0].mxu0
        %v578 = vpop.f32.mrb[0].mxu0
        %v579 = vadd.f32 0.0, %v578
        %v580 = vpop.f32.mrb[0].mxu0
        %581 = vdwg.mxu0
        %v586 = vunpack.c.l.b16 %v514
        %v587 = vunpack.c.l.b16 %v515
        %v588 = vunpack.c.l.b16 %v516
        %v589 = vunpack.c.l.b16 %v517
        %v590 = vpack.c.b16 %v587, %v586
        %v591 = vpack.c.b16 %v589, %v588
        %v595 = vsel %vm537, %v513, 0
        %597 = vmatprep.subr.bf16.mxu0 0
        %598 = vmatpush1.bf16.msra.mxu0 %v590
        %599 = vmatprep.subr.bf16.mxu0 0
        %600 = vmatpush1.bf16.msra.mxu0 %v591
        %601 = vmatprep.subr.bf16.mxu0 0
        %602 = vmatpush1.bf16.msra.mxu0 0
        %603 = vmatprep.subr.bf16.mxu0 0
        %604 = vmatpush1.bf16.msra.mxu0 0
        %605 = vmatprep.subr.bf16.mxu0 0
        %606 = vmatpush1.bf16.msra.mxu0 0
        %607 = vmatprep.subr.bf16.mxu0 0
        %608 = vmatpush1.bf16.msra.mxu0 0
        %609 = vmatprep.subr.bf16.mxu0 0
        %610 = vmatpush1.bf16.msra.mxu0 0
        %611 = vmatprep.subr.bf16.mxu0 0
        %612 = vmatpush1.bf16.msra.mxu0 0
        %613 = vmatprep.subr.bf16.mxu0 0
        %614 = vmatpush1.bf16.msra.mxu0 0
        %615 = vmatprep.subr.bf16.mxu0 0
        %616 = vmatpush1.bf16.msra.mxu0 0
        %617 = vmatprep.subr.bf16.mxu0 0
        %618 = vmatpush1.bf16.msra.mxu0 0
        %619 = vmatprep.subr.bf16.mxu0 0
        %620 = vmatpush1.bf16.msra.mxu0 0
        %621 = vmatprep.subr.bf16.mxu0 0
        %622 = vmatpush1.bf16.msra.mxu0 0
        %623 = vmatprep.subr.bf16.mxu0 0
        %624 = vmatpush1.bf16.msra.mxu0 0
        %625 = vmatprep.subr.bf16.mxu0 0
        %626 = vmatpush1.bf16.msra.mxu0 0
        %627 = vmatprep.subr.bf16.mxu0 0
        %628 = vmatpush1.bf16.msra.mxu0 0
        %629 = vmatprep.mubr.bf16.mxu0 0
        %630 = vmatmul.mubr.bf16.gmra.mrb[0].mxu0 %v595
        %v631 = vpop.f32.mrb[0].mxu0
        %v632 = vadd.f32 %v576, %v631
        %v633 = vpop.f32.mrb[0].mxu0
        %v634 = vpop.f32.mrb[0].mxu0
        %v635 = vadd.f32 %v579, %v634
        %v636 = vpop.f32.mrb[0].mxu0
        %637 = vdwg.mxu0
        %v638 = vld [vmem:[%s433] sm:$0xff]
        %v639 = vld [vmem:[%s433 + $0x8] sm:$0xff]
        %v640 = vpack.c.bf16 %v639, %v638
        %v641 = vld [vmem:[%s5] sm:$0xf]
        %v642 = vld [vmem:[%s5 + $0x4] sm:$0xf]
        %v643 = vld [vmem:[%s5 + $0x8] sm:$0xf]
        %v644 = vld [vmem:[%s5 + $0xc] sm:$0xf]
        %v649 = vunpack.c.l.b16 %v641
        %v650 = vunpack.c.l.b16 %v642
        %v651 = vunpack.c.l.b16 %v643
        %v652 = vunpack.c.l.b16 %v644
        %v653 = vpack.c.b16 %v650, %v649
        %v654 = vpack.c.b16 %v652, %v651
        %v658 = vsel %vm537, %v640, 0
        %660 = vmatprep.subr.bf16.mxu0 0
        %661 = vmatpush1.bf16.msra.mxu0 %v653
        %662 = vmatprep.subr.bf16.mxu0 0
        %663 = vmatpush1.bf16.msra.mxu0 %v654
        %664 = vmatprep.subr.bf16.mxu0 0
        %665 = vmatpush1.bf16.msra.mxu0 0
        %666 = vmatprep.subr.bf16.mxu0 0
        %667 = vmatpush1.bf16.msra.mxu0 0
        %668 = vmatprep.subr.bf16.mxu0 0
        %669 = vmatpush1.bf16.msra.mxu0 0
        %670 = vmatprep.subr.bf16.mxu0 0
        %671 = vmatpush1.bf16.msra.mxu0 0
        %672 = vmatprep.subr.bf16.mxu0 0
        %673 = vmatpush1.bf16.msra.mxu0 0
        %674 = vmatprep.subr.bf16.mxu0 0
        %675 = vmatpush1.bf16.msra.mxu0 0
        %676 = vmatprep.subr.bf16.mxu0 0
        %677 = vmatpush1.bf16.msra.mxu0 0
        %678 = vmatprep.subr.bf16.mxu0 0
        %679 = vmatpush1.bf16.msra.mxu0 0
        %680 = vmatprep.subr.bf16.mxu0 0
        %681 = vmatpush1.bf16.msra.mxu0 0
        %682 = vmatprep.subr.bf16.mxu0 0
        %683 = vmatpush1.bf16.msra.mxu0 0
        %684 = vmatprep.subr.bf16.mxu0 0
        %685 = vmatpush1.bf16.msra.mxu0 0
        %686 = vmatprep.subr.bf16.mxu0 0
        %687 = vmatpush1.bf16.msra.mxu0 0
        %688 = vmatprep.subr.bf16.mxu0 0
        %689 = vmatpush1.bf16.msra.mxu0 0
        %690 = vmatprep.subr.bf16.mxu0 0
        %691 = vmatpush1.bf16.msra.mxu0 0
        %692 = vmatprep.mubr.bf16.mxu0 0
        %693 = vmatmul.mubr.bf16.gmra.mrb[0].mxu0 %v658
        %v694 = vpop.f32.mrb[0].mxu0
        %v695 = vadd.f32 0.0, %v694
        %v696 = vpop.f32.mrb[0].mxu0
        %v697 = vpop.f32.mrb[0].mxu0
        %v698 = vadd.f32 0.0, %v697
        %v699 = vpop.f32.mrb[0].mxu0
        %700 = vdwg.mxu0
        %v701 = vadd.f32 %v632, %v695
        %v702 = vadd.f32 %v635, %v698
        %v703 = vld [vmem:[%s6] sm:$0x1]
        %v705 = vlaneseq
        %v706 = vshrl.u32 %v705, 7
        %v707 = vsub.s32 0, %v706
        %v708 = vrot.slane %v703, %v707
        %v710 = vadd.f32 %v701, %v708
        %v711 = vadd.f32 %v702, %v708
        %v712 = vmax.f32 %v710, 0.0
        %v713 = vmax.f32 %v711, 0.0
        %v714 = vpack.c.bf16 %v713, %v712
        %v715 = vld [vmem:[#allocation11] sm:$0xf]
        %v716 = vld [vmem:[#allocation11 + $0x4] sm:$0xf]
        %v717 = vld [vmem:[#allocation11 + $0x8] sm:$0xf]
        %v718 = vld [vmem:[#allocation11 + $0xc] sm:$0xf]
        %v719 = vld [vmem:[#allocation11 + $0x10] sm:$0xf]
        %v720 = vld [vmem:[#allocation11 + $0x14] sm:$0xf]
        %v721 = vld [vmem:[#allocation11 + $0x18] sm:$0xf]
        %v722 = vld [vmem:[#allocation11 + $0x1c] sm:$0xf]
        %v723 = vld [vmem:[#allocation11 + $0x20] sm:$0xf]
        %v724 = vld [vmem:[#allocation11 + $0x24] sm:$0xf]
        %v725 = vld [vmem:[#allocation11 + $0x28] sm:$0xf]
        %v726 = vld [vmem:[#allocation11 + $0x2c] sm:$0xf]
        %v727 = vld [vmem:[#allocation11 + $0x30] sm:$0xf]
        %v728 = vld [vmem:[#allocation11 + $0x34] sm:$0xf]
        %v729 = vld [vmem:[#allocation11 + $0x38] sm:$0xf]
        %v730 = vld [vmem:[#allocation11 + $0x3c] sm:$0xf]
        %v731 = vld [vmem:[%s8] sm:$0x1]
        %v733 = vlaneseq
        %v734 = vshrl.u32 %v733, 7
        %v735 = vsub.s32 0, %v734
        %v736 = vrot.slane %v731, %v735
        %v754 = vunpack.c.l.b16 %v715
        %v755 = vunpack.c.l.b16 %v716
        %v756 = vunpack.c.l.b16 %v717
        %v757 = vunpack.c.l.b16 %v718
        %v758 = vunpack.c.l.b16 %v719
        %v759 = vunpack.c.l.b16 %v720
        %v760 = vunpack.c.l.b16 %v721
        %v761 = vunpack.c.l.b16 %v722
        %v762 = vunpack.c.l.b16 %v723
        %v763 = vunpack.c.l.b16 %v724
        %v764 = vunpack.c.l.b16 %v725
        %v765 = vunpack.c.l.b16 %v726
        %v766 = vunpack.c.l.b16 %v727
        %v767 = vunpack.c.l.b16 %v728
        %v768 = vunpack.c.l.b16 %v729
        %v769 = vunpack.c.l.b16 %v730
        %v770 = vpack.c.b16 %v755, %v754
        %v771 = vpack.c.b16 %v757, %v756
        %v772 = vpack.c.b16 %v759, %v758
        %v773 = vpack.c.b16 %v761, %v760
        %v774 = vpack.c.b16 %v763, %v762
        %v775 = vpack.c.b16 %v765, %v764
        %v776 = vpack.c.b16 %v767, %v766
        %v777 = vpack.c.b16 %v769, %v768
        %786 = vmatprep.subr.bf16.mxu0 0
        %787 = vmatpush1.bf16.msra.mxu0 %v770
        %788 = vmatprep.subr.bf16.mxu0 0
        %789 = vmatpush1.bf16.msra.mxu0 %v771
        %790 = vmatprep.subr.bf16.mxu0 0
        %791 = vmatpush1.bf16.msra.mxu0 %v772
        %792 = vmatprep.subr.bf16.mxu0 0
        %793 = vmatpush1.bf16.msra.mxu0 %v773
        %794 = vmatprep.subr.bf16.mxu0 0
        %795 = vmatpush1.bf16.msra.mxu0 %v774
        %796 = vmatprep.subr.bf16.mxu0 0
        %797 = vmatpush1.bf16.msra.mxu0 %v775
        %798 = vmatprep.subr.bf16.mxu0 0
        %799 = vmatpush1.bf16.msra.mxu0 %v776
        %800 = vmatprep.subr.bf16.mxu0 0
        %801 = vmatpush1.bf16.msra.mxu0 %v777
        %802 = vmatprep.subr.bf16.mxu0 0
        %803 = vmatpush1.bf16.msra.mxu0 0
        %804 = vmatprep.subr.bf16.mxu0 0
        %805 = vmatpush1.bf16.msra.mxu0 0
        %806 = vmatprep.subr.bf16.mxu0 0
        %807 = vmatpush1.bf16.msra.mxu0 0
        %808 = vmatprep.subr.bf16.mxu0 0
        %809 = vmatpush1.bf16.msra.mxu0 0
        %810 = vmatprep.subr.bf16.mxu0 0
        %811 = vmatpush1.bf16.msra.mxu0 0
        %812 = vmatprep.subr.bf16.mxu0 0
        %813 = vmatpush1.bf16.msra.mxu0 0
        %814 = vmatprep.subr.bf16.mxu0 0
        %815 = vmatpush1.bf16.msra.mxu0 0
        %816 = vmatprep.subr.bf16.mxu0 0
        %817 = vmatpush1.bf16.msra.mxu0 0
        %818 = vmatprep.mubr.bf16.mxu0 0
        %819 = vmatmul.mubr.bf16.gmra.mrb[0].mxu0 %v714
        %v820 = vpop.f32.mrb[0].mxu0
        %v821 = vadd.f32 %v736, %v820
        %v822 = vpop.f32.mrb[0].mxu0
        %v823 = vpop.f32.mrb[0].mxu0
        %v824 = vadd.f32 %v736, %v823
        %v825 = vpop.f32.mrb[0].mxu0
        %826 = vdwg.mxu0
        %v827 = vpack.c.bf16 %v824, %v821
        %v829 = vunpack.c.l.b16 %v827
        %v830 = vunpack.c.h.b16 %v827
        %v831 = vpack.c.b16 %v829, %v829
        %v832 = vpack.c.b16 %v830, %v830
        %835 = vst [vmem:[%s489] sm:$0xf] %v831
        %836 = vst [vmem:[%s489 + $0x4] sm:$0xf] %v832
        %s837 = sand.u32 %s243, 1
        %s838 = scalar_lea.sflag [#allocation4], %s837
        %s839 = sand.u32 %s243, 1
        %s840 = smul.addr %s839, 8
        %s841 = scalar_lea.vmem [#allocation13], %s840
        // Predicated region
        $region81: #{tpu_custom_call.1} parent=55 // pred_check
          %p842 = pneg %p253
        $region82: #{tpu_custom_call.1} parent=55 // pred_check_branch
          %844 = sbr.rel (%p842) target = $region84
        $region83: #{tpu_custom_call.1} parent=55 // pred_region
          %s845 = smul.u32 2, %s31
          %s846 = ssub.s32 3, %s845
          %p847 = scmp.lt.s32.totalorder %s846, 2
          %s848 = scalar_select %p847, %s846, 2
          %s849 = smul.u32 64, %s848
          %s851 = ssub.s32 128, %s849
          %852 = vsyncadd %s838, %s851
          %p853 = scmp.ne.s32.totalorder 0, %s849
          %s854 = smul.addr %s845, 64
          %s855 = scalar_lea.hbm %s9, %s854
          %s856 = smul.u32 4, %s848
          %s857 = sshll.u32 %s841, 4
          %s858 = int_to_ptr.vmem [resolvable:$true] %s857
          %s859 = sshll.u32 %s856, 4
          %863 = dma.vmem_to_hbm [thread:$0]  (%p853), %s858, %s859, %s855, %s838, 64, 64, 4
        $region84: #{tpu_custom_call.1} parent=55 // pred_fallthru
          _
      $region56: #{tpu_custom_call.1} parent=5 // pred_fallthru
        _
      %p864 = scmp.le.s32.totalorder 2, %s26
      // Predicated region
      $region85: #{tpu_custom_call.1} parent=5 // pred_check
        %p865 = pneg %p864
      $region86: #{tpu_custom_call.1} parent=5 // pred_check_branch
        %867 = sbr.rel (%p865) target = $region88
      $region87: #{tpu_custom_call.1} parent=5 // pred_region
        %s868 = ssub.s32 %s26, 2
        // Predicated region
        $region89: #{tpu_custom_call.1} parent=87 // pred_check
          %p869 = pneg %p259
        $region90: #{tpu_custom_call.1} parent=87 // pred_check_branch
          %871 = sbr.rel (%p869) target = $region92
        $region91: #{tpu_custom_call.1} parent=87 // pred_region
          %s872 = sand.u32 %s244, 1
          %s873 = scalar_lea.sflag [#allocation4], %s872
          %s874 = sand.u32 %s244, 1
          %s875 = smul.addr %s874, 8
          %s876 = scalar_lea.vmem [#allocation13], %s875
          %877 = dma.done %s873, 128
        $region92: #{tpu_custom_call.1} parent=87 // pred_fallthru
          _
      $region88: #{tpu_custom_call.1} parent=5 // pred_fallthru
        _
    $region6: #{tpu_custom_call.1} parent=1 // loop_footer
      %s30 = sadd.s32 1, %s26
    $region7: #{tpu_custom_call.1} parent=1 // loop_footer_branch
      %25 = sbr.rel target = $region3
    $region8: #{tpu_custom_call.1} parent=1 // loop_exit
      _
    %878 = vsyncpa [#allocation3], 1
    %s879 = scalar_lea.sflag [#allocation3], 1
    %880 = vsyncpa %s879, 1
    %881 = vsyncpa [#allocation6], 1
    %s882 = scalar_lea.sflag [#allocation6], 1
    %883 = vsyncpa %s882, 1
    %884 = vsyncpa [#allocation9], 1
    %885 = vsyncpa [#allocation12], 1
    %886 = vsyncpa [#allocation4], 1
    %s887 = scalar_lea.sflag [#allocation4], 1
    %888 = vsyncpa %s887, 1

</llo_original>
